<compile_context>
chip_gen: v5e
topology: v5e:2x2
jax: 0.10.0
libtpu: 0.0.40
codegen_flags: <defaults>
</compile_context>

<pallas_src>
import math
from functools import partial

import jax
import jax.numpy as jnp
from jax import lax
from jax.experimental import pallas as pl
from jax.experimental.pallas import tpu as pltpu

LANES = 128  # lane width; class dim is padded to this for dense stores


def _fasttext_kernel(seq_len, batch_tile,
                     ids_ref,   # (B_pad*S,) int32, SMEM (scalar prefetch)
                     emb_ref,   # (V_pad, E) float32, VMEM-resident table
                     w_ref,     # (E, LANES) compute dtype, folded (w1@w2)/S
                     b_ref,     # (1, LANES) float32, folded bias (-1e30 in pad lanes)
                     out_ref,   # (TB, LANES) float32 probabilities
                     acc_ref):  # (TB, E) float32 scratch (per-row embedding sums)
    E = emb_ref.shape[1]
    bt = pl.program_id(0)
    base = bt * (batch_tile * seq_len)

    # Sum the seq_len embedding rows of each batch element in this tile.
    # The whole reduction lives inside one grid step: no per-token grid
    # overhead and no per-token HBM DMA (table is VMEM resident).
    for i in range(batch_tile):              # static unroll over the batch tile
        row_base = base + i * seq_len

        def tok_body(t, acc_row, row_base=row_base):
            tok = ids_ref[row_base + t]                     # scalar SMEM read
            return acc_row + emb_ref[pl.ds(tok, 1), :]      # (1, E) VMEM gather
        acc_ref[pl.ds(i, 1), :] = lax.fori_loop(
            0, seq_len, tok_body, jnp.zeros((1, E), jnp.float32), unroll=True)

    sums = acc_ref[...]                                     # (TB, E) f32 raw sums

    # One batched folded matmul for the tile: (TB, E) @ (E, LANES), f32 accumulate.
    # 1/S and fc1 are already folded into w_ref in the wrapper.
    logits = jnp.dot(sums.astype(w_ref.dtype), w_ref[...],
                     preferred_element_type=jnp.float32) + b_ref[...]

    # Softmax over class lanes; padded lanes carry a -1e30 bias -> prob 0.
    m = jnp.max(logits, axis=-1, keepdims=True)
    e = jnp.exp(logits - m)
    denom = jnp.sum(e, axis=-1, keepdims=True)
    out_ref[...] = e * pl.reciprocal(denom, approx=True)    # EUP reciprocal


def fasttext_forward(ids, emb_table, w1, b1, w2, b2, *,
                     compute_dtype=jnp.bfloat16, batch_tile=8):
    """FastText forward. ids: (B, S) int32. Returns (B, C) float32 probabilities.

    batch_tile: rows of the folded matmul per grid step. 8 is plenty for the
    tiny demo; use 128 (v5e) / 256 (v6e, v7x) at realistic batch sizes so the
    MXU systolic array is filled and the (TB, 128) output store is lane-dense.
    """
    B, S = ids.shape
    V, E = emb_table.shape
    C = w2.shape[1]
    assert C <= LANES, "class_num must fit in one lane group"

    # Fold fc1 into fc2 (valid: no nonlinearity between them in the reference
    # forward) and fold the 1/S of the sequence mean into the weight; the bias
    # is unaffected by the mean.
    w_fold = (w1 @ w2) / float(S)          # (E, C)
    b_fold = b1 @ w2 + b2                  # (1, C)

    # Lane-dense class padding; padded bias lanes are -1e30 so the in-kernel
    # softmax drives them to exactly 0 without an iota/where mask.
    w_pad = jnp.zeros((E, LANES), jnp.float32).at[:, :C].set(w_fold)
    b_pad = jnp.full((1, LANES), -1e30, jnp.float32).at[:, :C].set(b_fold)

    # Pad vocab rows to a sublane multiple.  The table stays f32: it is VMEM
    # resident (no per-token HBM bytes to save) and f32 keeps the dynamic
    # sublane gather on unpacked rows.  For very large vocabs store bf16 and/or
    # fall back to coalesced HBM gathers (v7x VMEM is 64 MiB vs 128 on v5e/v6e).
    V_pad = ((V + 7) // 8) * 8
    emb_pad = jnp.zeros((V_pad, E), jnp.float32).at[:V].set(
        emb_table.astype(jnp.float32))

    # Pad batch to the tile and flatten ids for the SMEM scalar prefetch.
    B_pad = ((B + batch_tile - 1) // batch_tile) * batch_tile
    ids_pad = jnp.zeros((B_pad, S), jnp.int32).at[:B].set(ids.astype(jnp.int32))
    ids_flat = ids_pad.reshape(-1)
    # TODO(synk): for very large B*S, chunk ids per batch tile (SMEM-blocked
    # input) instead of prefetching the whole flat id table into SMEM.

    n_tiles = B_pad // batch_tile

    grid_spec = pltpu.PrefetchScalarGridSpec(
        num_scalar_prefetch=1,             # ids_flat -> SMEM, read inside the kernel
        grid=(n_tiles,),                   # batch tiles only; seq loop is in-kernel
        in_specs=[
            # Constant block index -> whole table stays resident in VMEM.
            pl.BlockSpec((V_pad, E), lambda b, ids: (0, 0)),
            pl.BlockSpec((E, LANES), lambda b, ids: (0, 0)),
            pl.BlockSpec((1, LANES), lambda b, ids: (0, 0)),
        ],
        out_specs=pl.BlockSpec((batch_tile, LANES), lambda b, ids: (b, 0)),
        scratch_shapes=[pltpu.VMEM((batch_tile, E), jnp.float32)],
    )

    out_padded = pl.pallas_call(
        partial(_fasttext_kernel, S, batch_tile),
        grid_spec=grid_spec,
        out_shape=jax.ShapeDtypeStruct((B_pad, LANES), jnp.float32),
        compiler_params=pltpu.CompilerParams(
            dimension_semantics=("parallel",)),   # batch tiles split across TCs (v7x)
    )(ids_flat, emb_pad, w_pad.astype(compute_dtype), b_pad)

    return out_padded[:B, :C]


def reference_forward(ids, emb_table, w1, b1, w2, b2):
    x = jnp.take(emb_table, ids, axis=0)            # (B, S, E)
    h = x.mean(axis=1) @ w1 + b1                    # (B, H)
    logits = h @ w2 + b2                            # (B, C)
    return jax.nn.softmax(logits, axis=-1)


if __name__ == "__main__":
    # Small, module-consistent shapes.
    vocabulary_size = 50
    embedding_dim = 32
    hidden_dim = 32
    class_num = 5
    batch = 2
    seq = 8

    key = jax.random.PRNGKey(0)
    k_ids, k_emb, k_w1, k_b1, k_w2, k_b2 = jax.random.split(key, 6)

    ids = jax.random.randint(k_ids, (batch, seq), 0, vocabulary_size, dtype=jnp.int32)

    # nn.Embedding default init: N(0, 1)
    emb_table = jax.random.normal(k_emb, (vocabulary_size, embedding_dim), jnp.float32)

    # nn.Linear default init: U(-1/sqrt(fan_in), 1/sqrt(fan_in)); stored (in, out).
    bound1 = 1.0 / math.sqrt(embedding_dim)
    w1 = jax.random.uniform(k_w1, (embedding_dim, hidden_dim), jnp.float32, -bound1, bound1)
    b1 = jax.random.uniform(k_b1, (1, hidden_dim), jnp.float32, -bound1, bound1)
    bound2 = 1.0 / math.sqrt(hidden_dim)
    w2 = jax.random.uniform(k_w2, (hidden_dim, class_num), jnp.float32, -bound2, bound2)
    b2 = jax.random.uniform(k_b2, (1, class_num), jnp.float32, -bound2, bound2)

    ref = reference_forward(ids, emb_table, w1, b1, w2, b2)

    # f32 compute path (tight check; small slack for the fc1/fc2 fold + approx reciprocal).
    out_f32 = jax.block_until_ready(
        fasttext_forward(ids, emb_table, w1, b1, w2, b2, compute_dtype=jnp.float32))
    assert out_f32.shape == (batch, class_num)
    assert jnp.allclose(out_f32, ref, atol=2e-3, rtol=2e-3), (out_f32, ref)
    assert jnp.allclose(jnp.sum(out_f32, axis=-1), 1.0, atol=1e-2)

    # bf16 folded-weight path (bf16 MXU with f32 accumulation on all of v5e/v6e/v7x).
    out_bf16 = jax.block_until_ready(
        fasttext_forward(ids, emb_table, w1, b1, w2, b2, compute_dtype=jnp.bfloat16))
    assert out_bf16.shape == (batch, class_num)
    assert jnp.allclose(out_bf16, ref, atol=3e-2, rtol=3e-2), (out_bf16, ref)

    print("KERNEL_OK")
</pallas_src>

<mosaic_0001>
module attributes {stable_mosaic.version = 11 : i64} {
  func.func @_fasttext_kernel(%arg0: i32, %arg1: memref<64xi32, #tpu.memory_space<smem>>, %arg2: memref<56x32xf32, #tpu.memory_space<vmem>>, %arg3: memref<32x128xf32, #tpu.memory_space<vmem>>, %arg4: memref<1x128xf32, #tpu.memory_space<vmem>>, %arg5: memref<8x128xf32, #tpu.memory_space<vmem>>, %arg6: memref<8x32xf32, #tpu.memory_space<vmem>>) attributes {dimension_semantics = [#tpu.dimension_semantics<parallel>], iteration_bounds = array<i64: 1>, scalar_prefetch = 1 : i64, scratch_operands = 1 : i64, tpu.core_type = #tpu.core_type<tc>, window_params = [{pipeline_mode = #tpu.pipeline_mode<synchronous>, transform_indices = @transform_0, window_bounds = array<i64: 56, 32>}, {pipeline_mode = #tpu.pipeline_mode<synchronous>, transform_indices = @transform_1, window_bounds = array<i64: 32, 128>}, {pipeline_mode = #tpu.pipeline_mode<synchronous>, transform_indices = @transform_2, window_bounds = array<i64: 1, 128>}, {transform_indices = @transform_3, window_bounds = array<i64: 8, 128>}]} {
    %c64_i32 = arith.constant 64 : i32
    %0 = arith.muli %arg0, %c64_i32 : i32
    %c0_i32 = arith.constant 0 : i32
    %1 = arith.addi %0, %c0_i32 : i32
    %cst = arith.constant 0.000000e+00 : f32
    %2 = vector.broadcast %cst : f32 to vector<1x32xf32>
    %c0_i32_0 = arith.constant 0 : i32
    %3 = arith.addi %1, %c0_i32_0 : i32
    %4 = arith.index_cast %3 : i32 to index
    %5 = memref.load %arg1[%4] : memref<64xi32, #tpu.memory_space<smem>>
    %6 = arith.index_cast %5 : i32 to index
    %c0 = arith.constant 0 : index
    %7 = vector.load %arg2[%6, %c0] : memref<56x32xf32, #tpu.memory_space<vmem>>, vector<1x32xf32>
    %8 = arith.addf %2, %7 : vector<1x32xf32>
    %c1_i32 = arith.constant 1 : i32
    %9 = arith.addi %1, %c1_i32 : i32
    %10 = arith.index_cast %9 : i32 to index
    %11 = memref.load %arg1[%10] : memref<64xi32, #tpu.memory_space<smem>>
    %12 = arith.index_cast %11 : i32 to index
    %c0_1 = arith.constant 0 : index
    %13 = vector.load %arg2[%12, %c0_1] : memref<56x32xf32, #tpu.memory_space<vmem>>, vector<1x32xf32>
    %14 = arith.addf %8, %13 : vector<1x32xf32>
    %c2_i32 = arith.constant 2 : i32
    %15 = arith.addi %1, %c2_i32 : i32
    %16 = arith.index_cast %15 : i32 to index
    %17 = memref.load %arg1[%16] : memref<64xi32, #tpu.memory_space<smem>>
    %18 = arith.index_cast %17 : i32 to index
    %c0_2 = arith.constant 0 : index
    %19 = vector.load %arg2[%18, %c0_2] : memref<56x32xf32, #tpu.memory_space<vmem>>, vector<1x32xf32>
    %20 = arith.addf %14, %19 : vector<1x32xf32>
    %c3_i32 = arith.constant 3 : i32
    %21 = arith.addi %1, %c3_i32 : i32
    %22 = arith.index_cast %21 : i32 to index
    %23 = memref.load %arg1[%22] : memref<64xi32, #tpu.memory_space<smem>>
    %24 = arith.index_cast %23 : i32 to index
    %c0_3 = arith.constant 0 : index
    %25 = vector.load %arg2[%24, %c0_3] : memref<56x32xf32, #tpu.memory_space<vmem>>, vector<1x32xf32>
    %26 = arith.addf %20, %25 : vector<1x32xf32>
    %c4_i32 = arith.constant 4 : i32
    %27 = arith.addi %1, %c4_i32 : i32
    %28 = arith.index_cast %27 : i32 to index
    %29 = memref.load %arg1[%28] : memref<64xi32, #tpu.memory_space<smem>>
    %30 = arith.index_cast %29 : i32 to index
    %c0_4 = arith.constant 0 : index
    %31 = vector.load %arg2[%30, %c0_4] : memref<56x32xf32, #tpu.memory_space<vmem>>, vector<1x32xf32>
    %32 = arith.addf %26, %31 : vector<1x32xf32>
    %c5_i32 = arith.constant 5 : i32
    %33 = arith.addi %1, %c5_i32 : i32
    %34 = arith.index_cast %33 : i32 to index
    %35 = memref.load %arg1[%34] : memref<64xi32, #tpu.memory_space<smem>>
    %36 = arith.index_cast %35 : i32 to index
    %c0_5 = arith.constant 0 : index
    %37 = vector.load %arg2[%36, %c0_5] : memref<56x32xf32, #tpu.memory_space<vmem>>, vector<1x32xf32>
    %38 = arith.addf %32, %37 : vector<1x32xf32>
    %c6_i32 = arith.constant 6 : i32
    %39 = arith.addi %1, %c6_i32 : i32
    %40 = arith.index_cast %39 : i32 to index
    %41 = memref.load %arg1[%40] : memref<64xi32, #tpu.memory_space<smem>>
    %42 = arith.index_cast %41 : i32 to index
    %c0_6 = arith.constant 0 : index
    %43 = vector.load %arg2[%42, %c0_6] : memref<56x32xf32, #tpu.memory_space<vmem>>, vector<1x32xf32>
    %44 = arith.addf %38, %43 : vector<1x32xf32>
    %c7_i32 = arith.constant 7 : i32
    %45 = arith.addi %1, %c7_i32 : i32
    %46 = arith.index_cast %45 : i32 to index
    %47 = memref.load %arg1[%46] : memref<64xi32, #tpu.memory_space<smem>>
    %48 = arith.index_cast %47 : i32 to index
    %c0_7 = arith.constant 0 : index
    %49 = vector.load %arg2[%48, %c0_7] : memref<56x32xf32, #tpu.memory_space<vmem>>, vector<1x32xf32>
    %50 = arith.addf %44, %49 : vector<1x32xf32>
    %c8_i32 = arith.constant 8 : i32
    %c0_8 = arith.constant 0 : index
    %c0_9 = arith.constant 0 : index
    %51 = vector.load %arg6[%c0_8, %c0_9] : memref<8x32xf32, #tpu.memory_space<vmem>>, vector<1x32xf32>
    tpu.vector_store %arg6[%c0_8, %c0_9], %50 {strides = array<i32>} : memref<8x32xf32, #tpu.memory_space<vmem>>, vector<1x32xf32>,
    %c8_i32_10 = arith.constant 8 : i32
    %52 = arith.addi %0, %c8_i32_10 : i32
    %cst_11 = arith.constant 0.000000e+00 : f32
    %53 = vector.broadcast %cst_11 : f32 to vector<1x32xf32>
    %c0_i32_12 = arith.constant 0 : i32
    %54 = arith.addi %52, %c0_i32_12 : i32
    %55 = arith.index_cast %54 : i32 to index
    %56 = memref.load %arg1[%55] : memref<64xi32, #tpu.memory_space<smem>>
    %57 = arith.index_cast %56 : i32 to index
    %c0_13 = arith.constant 0 : index
    %58 = vector.load %arg2[%57, %c0_13] : memref<56x32xf32, #tpu.memory_space<vmem>>, vector<1x32xf32>
    %59 = arith.addf %53, %58 : vector<1x32xf32>
    %c1_i32_14 = arith.constant 1 : i32
    %60 = arith.addi %52, %c1_i32_14 : i32
    %61 = arith.index_cast %60 : i32 to index
    %62 = memref.load %arg1[%61] : memref<64xi32, #tpu.memory_space<smem>>
    %63 = arith.index_cast %62 : i32 to index
    %c0_15 = arith.constant 0 : index
    %64 = vector.load %arg2[%63, %c0_15] : memref<56x32xf32, #tpu.memory_space<vmem>>, vector<1x32xf32>
    %65 = arith.addf %59, %64 : vector<1x32xf32>
    %c2_i32_16 = arith.constant 2 : i32
    %66 = arith.addi %52, %c2_i32_16 : i32
    %67 = arith.index_cast %66 : i32 to index
    %68 = memref.load %arg1[%67] : memref<64xi32, #tpu.memory_space<smem>>
    %69 = arith.index_cast %68 : i32 to index
    %c0_17 = arith.constant 0 : index
    %70 = vector.load %arg2[%69, %c0_17] : memref<56x32xf32, #tpu.memory_space<vmem>>, vector<1x32xf32>
    %71 = arith.addf %65, %70 : vector<1x32xf32>
    %c3_i32_18 = arith.constant 3 : i32
    %72 = arith.addi %52, %c3_i32_18 : i32
    %73 = arith.index_cast %72 : i32 to index
    %74 = memref.load %arg1[%73] : memref<64xi32, #tpu.memory_space<smem>>
    %75 = arith.index_cast %74 : i32 to index
    %c0_19 = arith.constant 0 : index
    %76 = vector.load %arg2[%75, %c0_19] : memref<56x32xf32, #tpu.memory_space<vmem>>, vector<1x32xf32>
    %77 = arith.addf %71, %76 : vector<1x32xf32>
    %c4_i32_20 = arith.constant 4 : i32
    %78 = arith.addi %52, %c4_i32_20 : i32
    %79 = arith.index_cast %78 : i32 to index
    %80 = memref.load %arg1[%79] : memref<64xi32, #tpu.memory_space<smem>>
    %81 = arith.index_cast %80 : i32 to index
    %c0_21 = arith.constant 0 : index
    %82 = vector.load %arg2[%81, %c0_21] : memref<56x32xf32, #tpu.memory_space<vmem>>, vector<1x32xf32>
    %83 = arith.addf %77, %82 : vector<1x32xf32>
    %c5_i32_22 = arith.constant 5 : i32
    %84 = arith.addi %52, %c5_i32_22 : i32
    %85 = arith.index_cast %84 : i32 to index
    %86 = memref.load %arg1[%85] : memref<64xi32, #tpu.memory_space<smem>>
    %87 = arith.index_cast %86 : i32 to index
    %c0_23 = arith.constant 0 : index
    %88 = vector.load %arg2[%87, %c0_23] : memref<56x32xf32, #tpu.memory_space<vmem>>, vector<1x32xf32>
    %89 = arith.addf %83, %88 : vector<1x32xf32>
    %c6_i32_24 = arith.constant 6 : i32
    %90 = arith.addi %52, %c6_i32_24 : i32
    %91 = arith.index_cast %90 : i32 to index
    %92 = memref.load %arg1[%91] : memref<64xi32, #tpu.memory_space<smem>>
    %93 = arith.index_cast %92 : i32 to index
    %c0_25 = arith.constant 0 : index
    %94 = vector.load %arg2[%93, %c0_25] : memref<56x32xf32, #tpu.memory_space<vmem>>, vector<1x32xf32>
    %95 = arith.addf %89, %94 : vector<1x32xf32>
    %c7_i32_26 = arith.constant 7 : i32
    %96 = arith.addi %52, %c7_i32_26 : i32
    %97 = arith.index_cast %96 : i32 to index
    %98 = memref.load %arg1[%97] : memref<64xi32, #tpu.memory_space<smem>>
    %99 = arith.index_cast %98 : i32 to index
    %c0_27 = arith.constant 0 : index
    %100 = vector.load %arg2[%99, %c0_27] : memref<56x32xf32, #tpu.memory_space<vmem>>, vector<1x32xf32>
    %101 = arith.addf %95, %100 : vector<1x32xf32>
    %c8_i32_28 = arith.constant 8 : i32
    %c1 = arith.constant 1 : index
    %c0_29 = arith.constant 0 : index
    %102 = vector.load %arg6[%c1, %c0_29] : memref<8x32xf32, #tpu.memory_space<vmem>>, vector<1x32xf32>
    tpu.vector_store %arg6[%c1, %c0_29], %101 {strides = array<i32>} : memref<8x32xf32, #tpu.memory_space<vmem>>, vector<1x32xf32>,
    %c16_i32 = arith.constant 16 : i32
    %103 = arith.addi %0, %c16_i32 : i32
    %cst_30 = arith.constant 0.000000e+00 : f32
    %104 = vector.broadcast %cst_30 : f32 to vector<1x32xf32>
    %c0_i32_31 = arith.constant 0 : i32
    %105 = arith.addi %103, %c0_i32_31 : i32
    %106 = arith.index_cast %105 : i32 to index
    %107 = memref.load %arg1[%106] : memref<64xi32, #tpu.memory_space<smem>>
    %108 = arith.index_cast %107 : i32 to index
    %c0_32 = arith.constant 0 : index
    %109 = vector.load %arg2[%108, %c0_32] : memref<56x32xf32, #tpu.memory_space<vmem>>, vector<1x32xf32>
    %110 = arith.addf %104, %109 : vector<1x32xf32>
    %c1_i32_33 = arith.constant 1 : i32
    %111 = arith.addi %103, %c1_i32_33 : i32
    %112 = arith.index_cast %111 : i32 to index
    %113 = memref.load %arg1[%112] : memref<64xi32, #tpu.memory_space<smem>>
    %114 = arith.index_cast %113 : i32 to index
    %c0_34 = arith.constant 0 : index
    %115 = vector.load %arg2[%114, %c0_34] : memref<56x32xf32, #tpu.memory_space<vmem>>, vector<1x32xf32>
    %116 = arith.addf %110, %115 : vector<1x32xf32>
    %c2_i32_35 = arith.constant 2 : i32
    %117 = arith.addi %103, %c2_i32_35 : i32
    %118 = arith.index_cast %117 : i32 to index
    %119 = memref.load %arg1[%118] : memref<64xi32, #tpu.memory_space<smem>>
    %120 = arith.index_cast %119 : i32 to index
    %c0_36 = arith.constant 0 : index
    %121 = vector.load %arg2[%120, %c0_36] : memref<56x32xf32, #tpu.memory_space<vmem>>, vector<1x32xf32>
    %122 = arith.addf %116, %121 : vector<1x32xf32>
    %c3_i32_37 = arith.constant 3 : i32
    %123 = arith.addi %103, %c3_i32_37 : i32
    %124 = arith.index_cast %123 : i32 to index
    %125 = memref.load %arg1[%124] : memref<64xi32, #tpu.memory_space<smem>>
    %126 = arith.index_cast %125 : i32 to index
    %c0_38 = arith.constant 0 : index
    %127 = vector.load %arg2[%126, %c0_38] : memref<56x32xf32, #tpu.memory_space<vmem>>, vector<1x32xf32>
    %128 = arith.addf %122, %127 : vector<1x32xf32>
    %c4_i32_39 = arith.constant 4 : i32
    %129 = arith.addi %103, %c4_i32_39 : i32
    %130 = arith.index_cast %129 : i32 to index
    %131 = memref.load %arg1[%130] : memref<64xi32, #tpu.memory_space<smem>>
    %132 = arith.index_cast %131 : i32 to index
    %c0_40 = arith.constant 0 : index
    %133 = vector.load %arg2[%132, %c0_40] : memref<56x32xf32, #tpu.memory_space<vmem>>, vector<1x32xf32>
    %134 = arith.addf %128, %133 : vector<1x32xf32>
    %c5_i32_41 = arith.constant 5 : i32
    %135 = arith.addi %103, %c5_i32_41 : i32
    %136 = arith.index_cast %135 : i32 to index
    %137 = memref.load %arg1[%136] : memref<64xi32, #tpu.memory_space<smem>>
    %138 = arith.index_cast %137 : i32 to index
    %c0_42 = arith.constant 0 : index
    %139 = vector.load %arg2[%138, %c0_42] : memref<56x32xf32, #tpu.memory_space<vmem>>, vector<1x32xf32>
    %140 = arith.addf %134, %139 : vector<1x32xf32>
    %c6_i32_43 = arith.constant 6 : i32
    %141 = arith.addi %103, %c6_i32_43 : i32
    %142 = arith.index_cast %141 : i32 to index
    %143 = memref.load %arg1[%142] : memref<64xi32, #tpu.memory_space<smem>>
    %144 = arith.index_cast %143 : i32 to index
    %c0_44 = arith.constant 0 : index
    %145 = vector.load %arg2[%144, %c0_44] : memref<56x32xf32, #tpu.memory_space<vmem>>, vector<1x32xf32>
    %146 = arith.addf %140, %145 : vector<1x32xf32>
    %c7_i32_45 = arith.constant 7 : i32
    %147 = arith.addi %103, %c7_i32_45 : i32
    %148 = arith.index_cast %147 : i32 to index
    %149 = memref.load %arg1[%148] : memref<64xi32, #tpu.memory_space<smem>>
    %150 = arith.index_cast %149 : i32 to index
    %c0_46 = arith.constant 0 : index
    %151 = vector.load %arg2[%150, %c0_46] : memref<56x32xf32, #tpu.memory_space<vmem>>, vector<1x32xf32>
    %152 = arith.addf %146, %151 : vector<1x32xf32>
    %c8_i32_47 = arith.constant 8 : i32
    %c2 = arith.constant 2 : index
    %c0_48 = arith.constant 0 : index
    %153 = vector.load %arg6[%c2, %c0_48] : memref<8x32xf32, #tpu.memory_space<vmem>>, vector<1x32xf32>
    tpu.vector_store %arg6[%c2, %c0_48], %152 {strides = array<i32>} : memref<8x32xf32, #tpu.memory_space<vmem>>, vector<1x32xf32>,
    %c24_i32 = arith.constant 24 : i32
    %154 = arith.addi %0, %c24_i32 : i32
    %cst_49 = arith.constant 0.000000e+00 : f32
    %155 = vector.broadcast %cst_49 : f32 to vector<1x32xf32>
    %c0_i32_50 = arith.constant 0 : i32
    %156 = arith.addi %154, %c0_i32_50 : i32
    %157 = arith.index_cast %156 : i32 to index
    %158 = memref.load %arg1[%157] : memref<64xi32, #tpu.memory_space<smem>>
    %159 = arith.index_cast %158 : i32 to index
    %c0_51 = arith.constant 0 : index
    %160 = vector.load %arg2[%159, %c0_51] : memref<56x32xf32, #tpu.memory_space<vmem>>, vector<1x32xf32>
    %161 = arith.addf %155, %160 : vector<1x32xf32>
    %c1_i32_52 = arith.constant 1 : i32
    %162 = arith.addi %154, %c1_i32_52 : i32
    %163 = arith.index_cast %162 : i32 to index
    %164 = memref.load %arg1[%163] : memref<64xi32, #tpu.memory_space<smem>>
    %165 = arith.index_cast %164 : i32 to index
    %c0_53 = arith.constant 0 : index
    %166 = vector.load %arg2[%165, %c0_53] : memref<56x32xf32, #tpu.memory_space<vmem>>, vector<1x32xf32>
    %167 = arith.addf %161, %166 : vector<1x32xf32>
    %c2_i32_54 = arith.constant 2 : i32
    %168 = arith.addi %154, %c2_i32_54 : i32
    %169 = arith.index_cast %168 : i32 to index
    %170 = memref.load %arg1[%169] : memref<64xi32, #tpu.memory_space<smem>>
    %171 = arith.index_cast %170 : i32 to index
    %c0_55 = arith.constant 0 : index
    %172 = vector.load %arg2[%171, %c0_55] : memref<56x32xf32, #tpu.memory_space<vmem>>, vector<1x32xf32>
    %173 = arith.addf %167, %172 : vector<1x32xf32>
    %c3_i32_56 = arith.constant 3 : i32
    %174 = arith.addi %154, %c3_i32_56 : i32
    %175 = arith.index_cast %174 : i32 to index
    %176 = memref.load %arg1[%175] : memref<64xi32, #tpu.memory_space<smem>>
    %177 = arith.index_cast %176 : i32 to index
    %c0_57 = arith.constant 0 : index
    %178 = vector.load %arg2[%177, %c0_57] : memref<56x32xf32, #tpu.memory_space<vmem>>, vector<1x32xf32>
    %179 = arith.addf %173, %178 : vector<1x32xf32>
    %c4_i32_58 = arith.constant 4 : i32
    %180 = arith.addi %154, %c4_i32_58 : i32
    %181 = arith.index_cast %180 : i32 to index
    %182 = memref.load %arg1[%181] : memref<64xi32, #tpu.memory_space<smem>>
    %183 = arith.index_cast %182 : i32 to index
    %c0_59 = arith.constant 0 : index
    %184 = vector.load %arg2[%183, %c0_59] : memref<56x32xf32, #tpu.memory_space<vmem>>, vector<1x32xf32>
    %185 = arith.addf %179, %184 : vector<1x32xf32>
    %c5_i32_60 = arith.constant 5 : i32
    %186 = arith.addi %154, %c5_i32_60 : i32
    %187 = arith.index_cast %186 : i32 to index
    %188 = memref.load %arg1[%187] : memref<64xi32, #tpu.memory_space<smem>>
    %189 = arith.index_cast %188 : i32 to index
    %c0_61 = arith.constant 0 : index
    %190 = vector.load %arg2[%189, %c0_61] : memref<56x32xf32, #tpu.memory_space<vmem>>, vector<1x32xf32>
    %191 = arith.addf %185, %190 : vector<1x32xf32>
    %c6_i32_62 = arith.constant 6 : i32
    %192 = arith.addi %154, %c6_i32_62 : i32
    %193 = arith.index_cast %192 : i32 to index
    %194 = memref.load %arg1[%193] : memref<64xi32, #tpu.memory_space<smem>>
    %195 = arith.index_cast %194 : i32 to index
    %c0_63 = arith.constant 0 : index
    %196 = vector.load %arg2[%195, %c0_63] : memref<56x32xf32, #tpu.memory_space<vmem>>, vector<1x32xf32>
    %197 = arith.addf %191, %196 : vector<1x32xf32>
    %c7_i32_64 = arith.constant 7 : i32
    %198 = arith.addi %154, %c7_i32_64 : i32
    %199 = arith.index_cast %198 : i32 to index
    %200 = memref.load %arg1[%199] : memref<64xi32, #tpu.memory_space<smem>>
    %201 = arith.index_cast %200 : i32 to index
    %c0_65 = arith.constant 0 : index
    %202 = vector.load %arg2[%201, %c0_65] : memref<56x32xf32, #tpu.memory_space<vmem>>, vector<1x32xf32>
    %203 = arith.addf %197, %202 : vector<1x32xf32>
    %c8_i32_66 = arith.constant 8 : i32
    %c3 = arith.constant 3 : index
    %c0_67 = arith.constant 0 : index
    %204 = vector.load %arg6[%c3, %c0_67] : memref<8x32xf32, #tpu.memory_space<vmem>>, vector<1x32xf32>
    tpu.vector_store %arg6[%c3, %c0_67], %203 {strides = array<i32>} : memref<8x32xf32, #tpu.memory_space<vmem>>, vector<1x32xf32>,
    %c32_i32 = arith.constant 32 : i32
    %205 = arith.addi %0, %c32_i32 : i32
    %cst_68 = arith.constant 0.000000e+00 : f32
    %206 = vector.broadcast %cst_68 : f32 to vector<1x32xf32>
    %c0_i32_69 = arith.constant 0 : i32
    %207 = arith.addi %205, %c0_i32_69 : i32
    %208 = arith.index_cast %207 : i32 to index
    %209 = memref.load %arg1[%208] : memref<64xi32, #tpu.memory_space<smem>>
    %210 = arith.index_cast %209 : i32 to index
    %c0_70 = arith.constant 0 : index
    %211 = vector.load %arg2[%210, %c0_70] : memref<56x32xf32, #tpu.memory_space<vmem>>, vector<1x32xf32>
    %212 = arith.addf %206, %211 : vector<1x32xf32>
    %c1_i32_71 = arith.constant 1 : i32
    %213 = arith.addi %205, %c1_i32_71 : i32
    %214 = arith.index_cast %213 : i32 to index
    %215 = memref.load %arg1[%214] : memref<64xi32, #tpu.memory_space<smem>>
    %216 = arith.index_cast %215 : i32 to index
    %c0_72 = arith.constant 0 : index
    %217 = vector.load %arg2[%216, %c0_72] : memref<56x32xf32, #tpu.memory_space<vmem>>, vector<1x32xf32>
    %218 = arith.addf %212, %217 : vector<1x32xf32>
    %c2_i32_73 = arith.constant 2 : i32
    %219 = arith.addi %205, %c2_i32_73 : i32
    %220 = arith.index_cast %219 : i32 to index
    %221 = memref.load %arg1[%220] : memref<64xi32, #tpu.memory_space<smem>>
    %222 = arith.index_cast %221 : i32 to index
    %c0_74 = arith.constant 0 : index
    %223 = vector.load %arg2[%222, %c0_74] : memref<56x32xf32, #tpu.memory_space<vmem>>, vector<1x32xf32>
    %224 = arith.addf %218, %223 : vector<1x32xf32>
    %c3_i32_75 = arith.constant 3 : i32
    %225 = arith.addi %205, %c3_i32_75 : i32
    %226 = arith.index_cast %225 : i32 to index
    %227 = memref.load %arg1[%226] : memref<64xi32, #tpu.memory_space<smem>>
    %228 = arith.index_cast %227 : i32 to index
    %c0_76 = arith.constant 0 : index
    %229 = vector.load %arg2[%228, %c0_76] : memref<56x32xf32, #tpu.memory_space<vmem>>, vector<1x32xf32>
    %230 = arith.addf %224, %229 : vector<1x32xf32>
    %c4_i32_77 = arith.constant 4 : i32
    %231 = arith.addi %205, %c4_i32_77 : i32
    %232 = arith.index_cast %231 : i32 to index
    %233 = memref.load %arg1[%232] : memref<64xi32, #tpu.memory_space<smem>>
    %234 = arith.index_cast %233 : i32 to index
    %c0_78 = arith.constant 0 : index
    %235 = vector.load %arg2[%234, %c0_78] : memref<56x32xf32, #tpu.memory_space<vmem>>, vector<1x32xf32>
    %236 = arith.addf %230, %235 : vector<1x32xf32>
    %c5_i32_79 = arith.constant 5 : i32
    %237 = arith.addi %205, %c5_i32_79 : i32
    %238 = arith.index_cast %237 : i32 to index
    %239 = memref.load %arg1[%238] : memref<64xi32, #tpu.memory_space<smem>>
    %240 = arith.index_cast %239 : i32 to index
    %c0_80 = arith.constant 0 : index
    %241 = vector.load %arg2[%240, %c0_80] : memref<56x32xf32, #tpu.memory_space<vmem>>, vector<1x32xf32>
    %242 = arith.addf %236, %241 : vector<1x32xf32>
    %c6_i32_81 = arith.constant 6 : i32
    %243 = arith.addi %205, %c6_i32_81 : i32
    %244 = arith.index_cast %243 : i32 to index
    %245 = memref.load %arg1[%244] : memref<64xi32, #tpu.memory_space<smem>>
    %246 = arith.index_cast %245 : i32 to index
    %c0_82 = arith.constant 0 : index
    %247 = vector.load %arg2[%246, %c0_82] : memref<56x32xf32, #tpu.memory_space<vmem>>, vector<1x32xf32>
    %248 = arith.addf %242, %247 : vector<1x32xf32>
    %c7_i32_83 = arith.constant 7 : i32
    %249 = arith.addi %205, %c7_i32_83 : i32
    %250 = arith.index_cast %249 : i32 to index
    %251 = memref.load %arg1[%250] : memref<64xi32, #tpu.memory_space<smem>>
    %252 = arith.index_cast %251 : i32 to index
    %c0_84 = arith.constant 0 : index
    %253 = vector.load %arg2[%252, %c0_84] : memref<56x32xf32, #tpu.memory_space<vmem>>, vector<1x32xf32>
    %254 = arith.addf %248, %253 : vector<1x32xf32>
    %c8_i32_85 = arith.constant 8 : i32
    %c4 = arith.constant 4 : index
    %c0_86 = arith.constant 0 : index
    %255 = vector.load %arg6[%c4, %c0_86] : memref<8x32xf32, #tpu.memory_space<vmem>>, vector<1x32xf32>
    tpu.vector_store %arg6[%c4, %c0_86], %254 {strides = array<i32>} : memref<8x32xf32, #tpu.memory_space<vmem>>, vector<1x32xf32>,
    %c40_i32 = arith.constant 40 : i32
    %256 = arith.addi %0, %c40_i32 : i32
    %cst_87 = arith.constant 0.000000e+00 : f32
    %257 = vector.broadcast %cst_87 : f32 to vector<1x32xf32>
    %c0_i32_88 = arith.constant 0 : i32
    %258 = arith.addi %256, %c0_i32_88 : i32
    %259 = arith.index_cast %258 : i32 to index
    %260 = memref.load %arg1[%259] : memref<64xi32, #tpu.memory_space<smem>>
    %261 = arith.index_cast %260 : i32 to index
    %c0_89 = arith.constant 0 : index
    %262 = vector.load %arg2[%261, %c0_89] : memref<56x32xf32, #tpu.memory_space<vmem>>, vector<1x32xf32>
    %263 = arith.addf %257, %262 : vector<1x32xf32>
    %c1_i32_90 = arith.constant 1 : i32
    %264 = arith.addi %256, %c1_i32_90 : i32
    %265 = arith.index_cast %264 : i32 to index
    %266 = memref.load %arg1[%265] : memref<64xi32, #tpu.memory_space<smem>>
    %267 = arith.index_cast %266 : i32 to index
    %c0_91 = arith.constant 0 : index
    %268 = vector.load %arg2[%267, %c0_91] : memref<56x32xf32, #tpu.memory_space<vmem>>, vector<1x32xf32>
    %269 = arith.addf %263, %268 : vector<1x32xf32>
    %c2_i32_92 = arith.constant 2 : i32
    %270 = arith.addi %256, %c2_i32_92 : i32
    %271 = arith.index_cast %270 : i32 to index
    %272 = memref.load %arg1[%271] : memref<64xi32, #tpu.memory_space<smem>>
    %273 = arith.index_cast %272 : i32 to index
    %c0_93 = arith.constant 0 : index
    %274 = vector.load %arg2[%273, %c0_93] : memref<56x32xf32, #tpu.memory_space<vmem>>, vector<1x32xf32>
    %275 = arith.addf %269, %274 : vector<1x32xf32>
    %c3_i32_94 = arith.constant 3 : i32
    %276 = arith.addi %256, %c3_i32_94 : i32
    %277 = arith.index_cast %276 : i32 to index
    %278 = memref.load %arg1[%277] : memref<64xi32, #tpu.memory_space<smem>>
    %279 = arith.index_cast %278 : i32 to index
    %c0_95 = arith.constant 0 : index
    %280 = vector.load %arg2[%279, %c0_95] : memref<56x32xf32, #tpu.memory_space<vmem>>, vector<1x32xf32>
    %281 = arith.addf %275, %280 : vector<1x32xf32>
    %c4_i32_96 = arith.constant 4 : i32
    %282 = arith.addi %256, %c4_i32_96 : i32
    %283 = arith.index_cast %282 : i32 to index
    %284 = memref.load %arg1[%283] : memref<64xi32, #tpu.memory_space<smem>>
    %285 = arith.index_cast %284 : i32 to index
    %c0_97 = arith.constant 0 : index
    %286 = vector.load %arg2[%285, %c0_97] : memref<56x32xf32, #tpu.memory_space<vmem>>, vector<1x32xf32>
    %287 = arith.addf %281, %286 : vector<1x32xf32>
    %c5_i32_98 = arith.constant 5 : i32
    %288 = arith.addi %256, %c5_i32_98 : i32
    %289 = arith.index_cast %288 : i32 to index
    %290 = memref.load %arg1[%289] : memref<64xi32, #tpu.memory_space<smem>>
    %291 = arith.index_cast %290 : i32 to index
    %c0_99 = arith.constant 0 : index
    %292 = vector.load %arg2[%291, %c0_99] : memref<56x32xf32, #tpu.memory_space<vmem>>, vector<1x32xf32>
    %293 = arith.addf %287, %292 : vector<1x32xf32>
    %c6_i32_100 = arith.constant 6 : i32
    %294 = arith.addi %256, %c6_i32_100 : i32
    %295 = arith.index_cast %294 : i32 to index
    %296 = memref.load %arg1[%295] : memref<64xi32, #tpu.memory_space<smem>>
    %297 = arith.index_cast %296 : i32 to index
    %c0_101 = arith.constant 0 : index
    %298 = vector.load %arg2[%297, %c0_101] : memref<56x32xf32, #tpu.memory_space<vmem>>, vector<1x32xf32>
    %299 = arith.addf %293, %298 : vector<1x32xf32>
    %c7_i32_102 = arith.constant 7 : i32
    %300 = arith.addi %256, %c7_i32_102 : i32
    %301 = arith.index_cast %300 : i32 to index
    %302 = memref.load %arg1[%301] : memref<64xi32, #tpu.memory_space<smem>>
    %303 = arith.index_cast %302 : i32 to index
    %c0_103 = arith.constant 0 : index
    %304 = vector.load %arg2[%303, %c0_103] : memref<56x32xf32, #tpu.memory_space<vmem>>, vector<1x32xf32>
    %305 = arith.addf %299, %304 : vector<1x32xf32>
    %c8_i32_104 = arith.constant 8 : i32
    %c5 = arith.constant 5 : index
    %c0_105 = arith.constant 0 : index
    %306 = vector.load %arg6[%c5, %c0_105] : memref<8x32xf32, #tpu.memory_space<vmem>>, vector<1x32xf32>
    tpu.vector_store %arg6[%c5, %c0_105], %305 {strides = array<i32>} : memref<8x32xf32, #tpu.memory_space<vmem>>, vector<1x32xf32>,
    %c48_i32 = arith.constant 48 : i32
    %307 = arith.addi %0, %c48_i32 : i32
    %cst_106 = arith.constant 0.000000e+00 : f32
    %308 = vector.broadcast %cst_106 : f32 to vector<1x32xf32>
    %c0_i32_107 = arith.constant 0 : i32
    %309 = arith.addi %307, %c0_i32_107 : i32
    %310 = arith.index_cast %309 : i32 to index
    %311 = memref.load %arg1[%310] : memref<64xi32, #tpu.memory_space<smem>>
    %312 = arith.index_cast %311 : i32 to index
    %c0_108 = arith.constant 0 : index
    %313 = vector.load %arg2[%312, %c0_108] : memref<56x32xf32, #tpu.memory_space<vmem>>, vector<1x32xf32>
    %314 = arith.addf %308, %313 : vector<1x32xf32>
    %c1_i32_109 = arith.constant 1 : i32
    %315 = arith.addi %307, %c1_i32_109 : i32
    %316 = arith.index_cast %315 : i32 to index
    %317 = memref.load %arg1[%316] : memref<64xi32, #tpu.memory_space<smem>>
    %318 = arith.index_cast %317 : i32 to index
    %c0_110 = arith.constant 0 : index
    %319 = vector.load %arg2[%318, %c0_110] : memref<56x32xf32, #tpu.memory_space<vmem>>, vector<1x32xf32>
    %320 = arith.addf %314, %319 : vector<1x32xf32>
    %c2_i32_111 = arith.constant 2 : i32
    %321 = arith.addi %307, %c2_i32_111 : i32
    %322 = arith.index_cast %321 : i32 to index
    %323 = memref.load %arg1[%322] : memref<64xi32, #tpu.memory_space<smem>>
    %324 = arith.index_cast %323 : i32 to index
    %c0_112 = arith.constant 0 : index
    %325 = vector.load %arg2[%324, %c0_112] : memref<56x32xf32, #tpu.memory_space<vmem>>, vector<1x32xf32>
    %326 = arith.addf %320, %325 : vector<1x32xf32>
    %c3_i32_113 = arith.constant 3 : i32
    %327 = arith.addi %307, %c3_i32_113 : i32
    %328 = arith.index_cast %327 : i32 to index
    %329 = memref.load %arg1[%328] : memref<64xi32, #tpu.memory_space<smem>>
    %330 = arith.index_cast %329 : i32 to index
    %c0_114 = arith.constant 0 : index
    %331 = vector.load %arg2[%330, %c0_114] : memref<56x32xf32, #tpu.memory_space<vmem>>, vector<1x32xf32>
    %332 = arith.addf %326, %331 : vector<1x32xf32>
    %c4_i32_115 = arith.constant 4 : i32
    %333 = arith.addi %307, %c4_i32_115 : i32
    %334 = arith.index_cast %333 : i32 to index
    %335 = memref.load %arg1[%334] : memref<64xi32, #tpu.memory_space<smem>>
    %336 = arith.index_cast %335 : i32 to index
    %c0_116 = arith.constant 0 : index
    %337 = vector.load %arg2[%336, %c0_116] : memref<56x32xf32, #tpu.memory_space<vmem>>, vector<1x32xf32>
    %338 = arith.addf %332, %337 : vector<1x32xf32>
    %c5_i32_117 = arith.constant 5 : i32
    %339 = arith.addi %307, %c5_i32_117 : i32
    %340 = arith.index_cast %339 : i32 to index
    %341 = memref.load %arg1[%340] : memref<64xi32, #tpu.memory_space<smem>>
    %342 = arith.index_cast %341 : i32 to index
    %c0_118 = arith.constant 0 : index
    %343 = vector.load %arg2[%342, %c0_118] : memref<56x32xf32, #tpu.memory_space<vmem>>, vector<1x32xf32>
    %344 = arith.addf %338, %343 : vector<1x32xf32>
    %c6_i32_119 = arith.constant 6 : i32
    %345 = arith.addi %307, %c6_i32_119 : i32
    %346 = arith.index_cast %345 : i32 to index
    %347 = memref.load %arg1[%346] : memref<64xi32, #tpu.memory_space<smem>>
    %348 = arith.index_cast %347 : i32 to index
    %c0_120 = arith.constant 0 : index
    %349 = vector.load %arg2[%348, %c0_120] : memref<56x32xf32, #tpu.memory_space<vmem>>, vector<1x32xf32>
    %350 = arith.addf %344, %349 : vector<1x32xf32>
    %c7_i32_121 = arith.constant 7 : i32
    %351 = arith.addi %307, %c7_i32_121 : i32
    %352 = arith.index_cast %351 : i32 to index
    %353 = memref.load %arg1[%352] : memref<64xi32, #tpu.memory_space<smem>>
    %354 = arith.index_cast %353 : i32 to index
    %c0_122 = arith.constant 0 : index
    %355 = vector.load %arg2[%354, %c0_122] : memref<56x32xf32, #tpu.memory_space<vmem>>, vector<1x32xf32>
    %356 = arith.addf %350, %355 : vector<1x32xf32>
    %c8_i32_123 = arith.constant 8 : i32
    %c6 = arith.constant 6 : index
    %c0_124 = arith.constant 0 : index
    %357 = vector.load %arg6[%c6, %c0_124] : memref<8x32xf32, #tpu.memory_space<vmem>>, vector<1x32xf32>
    tpu.vector_store %arg6[%c6, %c0_124], %356 {strides = array<i32>} : memref<8x32xf32, #tpu.memory_space<vmem>>, vector<1x32xf32>,
    %c56_i32 = arith.constant 56 : i32
    %358 = arith.addi %0, %c56_i32 : i32
    %cst_125 = arith.constant 0.000000e+00 : f32
    %359 = vector.broadcast %cst_125 : f32 to vector<1x32xf32>
    %c0_i32_126 = arith.constant 0 : i32
    %360 = arith.addi %358, %c0_i32_126 : i32
    %361 = arith.index_cast %360 : i32 to index
    %362 = memref.load %arg1[%361] : memref<64xi32, #tpu.memory_space<smem>>
    %363 = arith.index_cast %362 : i32 to index
    %c0_127 = arith.constant 0 : index
    %364 = vector.load %arg2[%363, %c0_127] : memref<56x32xf32, #tpu.memory_space<vmem>>, vector<1x32xf32>
    %365 = arith.addf %359, %364 : vector<1x32xf32>
    %c1_i32_128 = arith.constant 1 : i32
    %366 = arith.addi %358, %c1_i32_128 : i32
    %367 = arith.index_cast %366 : i32 to index
    %368 = memref.load %arg1[%367] : memref<64xi32, #tpu.memory_space<smem>>
    %369 = arith.index_cast %368 : i32 to index
    %c0_129 = arith.constant 0 : index
    %370 = vector.load %arg2[%369, %c0_129] : memref<56x32xf32, #tpu.memory_space<vmem>>, vector<1x32xf32>
    %371 = arith.addf %365, %370 : vector<1x32xf32>
    %c2_i32_130 = arith.constant 2 : i32
    %372 = arith.addi %358, %c2_i32_130 : i32
    %373 = arith.index_cast %372 : i32 to index
    %374 = memref.load %arg1[%373] : memref<64xi32, #tpu.memory_space<smem>>
    %375 = arith.index_cast %374 : i32 to index
    %c0_131 = arith.constant 0 : index
    %376 = vector.load %arg2[%375, %c0_131] : memref<56x32xf32, #tpu.memory_space<vmem>>, vector<1x32xf32>
    %377 = arith.addf %371, %376 : vector<1x32xf32>
    %c3_i32_132 = arith.constant 3 : i32
    %378 = arith.addi %358, %c3_i32_132 : i32
    %379 = arith.index_cast %378 : i32 to index
    %380 = memref.load %arg1[%379] : memref<64xi32, #tpu.memory_space<smem>>
    %381 = arith.index_cast %380 : i32 to index
    %c0_133 = arith.constant 0 : index
    %382 = vector.load %arg2[%381, %c0_133] : memref<56x32xf32, #tpu.memory_space<vmem>>, vector<1x32xf32>
    %383 = arith.addf %377, %382 : vector<1x32xf32>
    %c4_i32_134 = arith.constant 4 : i32
    %384 = arith.addi %358, %c4_i32_134 : i32
    %385 = arith.index_cast %384 : i32 to index
    %386 = memref.load %arg1[%385] : memref<64xi32, #tpu.memory_space<smem>>
    %387 = arith.index_cast %386 : i32 to index
    %c0_135 = arith.constant 0 : index
    %388 = vector.load %arg2[%387, %c0_135] : memref<56x32xf32, #tpu.memory_space<vmem>>, vector<1x32xf32>
    %389 = arith.addf %383, %388 : vector<1x32xf32>
    %c5_i32_136 = arith.constant 5 : i32
    %390 = arith.addi %358, %c5_i32_136 : i32
    %391 = arith.index_cast %390 : i32 to index
    %392 = memref.load %arg1[%391] : memref<64xi32, #tpu.memory_space<smem>>
    %393 = arith.index_cast %392 : i32 to index
    %c0_137 = arith.constant 0 : index
    %394 = vector.load %arg2[%393, %c0_137] : memref<56x32xf32, #tpu.memory_space<vmem>>, vector<1x32xf32>
    %395 = arith.addf %389, %394 : vector<1x32xf32>
    %c6_i32_138 = arith.constant 6 : i32
    %396 = arith.addi %358, %c6_i32_138 : i32
    %397 = arith.index_cast %396 : i32 to index
    %398 = memref.load %arg1[%397] : memref<64xi32, #tpu.memory_space<smem>>
    %399 = arith.index_cast %398 : i32 to index
    %c0_139 = arith.constant 0 : index
    %400 = vector.load %arg2[%399, %c0_139] : memref<56x32xf32, #tpu.memory_space<vmem>>, vector<1x32xf32>
    %401 = arith.addf %395, %400 : vector<1x32xf32>
    %c7_i32_140 = arith.constant 7 : i32
    %402 = arith.addi %358, %c7_i32_140 : i32
    %403 = arith.index_cast %402 : i32 to index
    %404 = memref.load %arg1[%403] : memref<64xi32, #tpu.memory_space<smem>>
    %405 = arith.index_cast %404 : i32 to index
    %c0_141 = arith.constant 0 : index
    %406 = vector.load %arg2[%405, %c0_141] : memref<56x32xf32, #tpu.memory_space<vmem>>, vector<1x32xf32>
    %407 = arith.addf %401, %406 : vector<1x32xf32>
    %c8_i32_142 = arith.constant 8 : i32
    %c7 = arith.constant 7 : index
    %c0_143 = arith.constant 0 : index
    %408 = vector.load %arg6[%c7, %c0_143] : memref<8x32xf32, #tpu.memory_space<vmem>>, vector<1x32xf32>
    tpu.vector_store %arg6[%c7, %c0_143], %407 {strides = array<i32>} : memref<8x32xf32, #tpu.memory_space<vmem>>, vector<1x32xf32>,
    %c0_144 = arith.constant 0 : index
    %c0_145 = arith.constant 0 : index
    %409 = vector.load %arg6[%c0_144, %c0_145] : memref<8x32xf32, #tpu.memory_space<vmem>>, vector<8x32xf32>
    %c0_146 = arith.constant 0 : index
    %c0_147 = arith.constant 0 : index
    %410 = vector.load %arg3[%c0_146, %c0_147] : memref<32x128xf32, #tpu.memory_space<vmem>>, vector<32x128xf32>
    %cst_148 = arith.constant dense<0.000000e+00> : vector<8x128xf32>
    %411 = tpu.matmul %409, %410, %cst_148 {dimension_numbers = #tpu.dot_dimension_numbers<[1], [0], [0], [1], [0, 0, 1, 1], [], []>} : vector<8x32xf32>, vector<32x128xf32>, vector<8x128xf32> -> vector<8x128xf32>
    %c0_149 = arith.constant 0 : index
    %c0_150 = arith.constant 0 : index
    %412 = vector.load %arg4[%c0_149, %c0_150] : memref<1x128xf32, #tpu.memory_space<vmem>>, vector<1x128xf32>
    %413 = vector.broadcast %412 : vector<1x128xf32> to vector<8x128xf32>
    %414 = arith.addf %411, %413 : vector<8x128xf32>
    %cst_151 = arith.constant dense<0xFF800000> : vector<8xf32>
    %415 = vector.multi_reduction <maximumf>, %414, %cst_151 [1] : vector<8x128xf32> to vector<8xf32>
    %416 = vector.shape_cast %415 : vector<8xf32> to vector<8x1xf32>
    %417 = vector.broadcast %416 : vector<8x1xf32> to vector<8x128xf32>
    %418 = arith.subf %414, %417 : vector<8x128xf32>
    %419 = math.exp %418 : vector<8x128xf32>
    %cst_152 = arith.constant dense<0.000000e+00> : vector<8xf32>
    %420 = vector.multi_reduction <add>, %419, %cst_152 [1] : vector<8x128xf32> to vector<8xf32>
    %421 = vector.shape_cast %420 : vector<8xf32> to vector<8x1xf32>
    %422 = tpu.reciprocal %421 {approx = true} : vector<8x1xf32> -> vector<8x1xf32>
    %423 = vector.broadcast %422 : vector<8x1xf32> to vector<8x128xf32>
    %424 = arith.mulf %419, %423 : vector<8x128xf32>
    %c0_153 = arith.constant 0 : index
    %c0_154 = arith.constant 0 : index
    %425 = vector.load %arg5[%c0_153, %c0_154] : memref<8x128xf32, #tpu.memory_space<vmem>>, vector<8x128xf32>
    tpu.vector_store %arg5[%c0_153, %c0_154], %424 {strides = array<i32>} : memref<8x128xf32, #tpu.memory_space<vmem>>, vector<8x128xf32>,
    return
  }
  func.func @transform_0(%arg0: i32, %arg1: memref<64xi32, #tpu.memory_space<smem>>) -> (i32, i32) {
    %c0_i32 = arith.constant 0 : i32
    %c0_i32_0 = arith.constant 0 : i32
    %c0_i32_1 = arith.constant 0 : i32
    return %c0_i32, %c0_i32_0 : i32, i32
  }
  func.func @transform_1(%arg0: i32, %arg1: memref<64xi32, #tpu.memory_space<smem>>) -> (i32, i32) {
    %c0_i32 = arith.constant 0 : i32
    %c0_i32_0 = arith.constant 0 : i32
    %c0_i32_1 = arith.constant 0 : i32
    return %c0_i32, %c0_i32_0 : i32, i32
  }
  func.func @transform_2(%arg0: i32, %arg1: memref<64xi32, #tpu.memory_space<smem>>) -> (i32, i32) {
    %c0_i32 = arith.constant 0 : i32
    %c0_i32_0 = arith.constant 0 : i32
    %c0_i32_1 = arith.constant 0 : i32
    return %c0_i32, %c0_i32_0 : i32, i32
  }
  func.func @transform_3(%arg0: i32, %arg1: memref<64xi32, #tpu.memory_space<smem>>) -> (i32, i32) {
    %c0_i32 = arith.constant 0 : i32
    %c0_i32_0 = arith.constant 0 : i32
    return %arg0, %c0_i32 : i32, i32
  }
}

</mosaic_0001>

<llo_original>
// kernel: tpu_custom_call.1
$region0: #{tpu_custom_call.1}
  #allocation0 [shape = 'u32[]', space=smem, size = 0x4, offset = 0x4, fixed_abs, tag = 'smem constant byte address 0x4 - core index']
  #allocation1 [shape = 'u32[72,128]{1,0:T(1,128)}', space=vmem, size = 0x9000, scoped, tag = 'internal scratch']
  #allocation2 [shape = 'f32[8,32]{1,0:T(8,128)}', space=vmem, size = 0x1000, scoped, tag = 'scratch operand']
  #allocation3 [shape = 's32[1]{0}', space=sflag, size = 0x4, scoped, tag = 'scoped memory for tpu_custom_call.1']
  #allocation4 [shape = 'u8[512]{0}', space=smem, size = 0x200, scoped, tag = 'prefetched SMEM operand 0']
  %s0 = inlined_call_operand.vmem [shape: s32[64], index: 0, kind: input, shape index: {}]
  %s1 = inlined_call_operand.vmem [shape: f32[56,32], index: 1, kind: input, shape index: {}]
  %s2 = inlined_call_operand.vmem [shape: f32[32,128], index: 2, kind: input, shape index: {}]
  %s3 = inlined_call_operand.vmem [shape: f32[1,128], index: 3, kind: input, shape index: {}]
  %s4 = inlined_call_operand.hbm [shape: f32[8,128], index: 4, kind: output, shape index: {}]
  %s5 = sld [smem:[#allocation0]]
  $region22: #{tpu_custom_call.1} parent=0
    _
  %s7 = ssub.s32 1, %s5
  %s8 = scalar_select 0, %s7, %s5
  %s10 = sshll.u32 %s0, 4
  %s11 = int_to_ptr.vmem [resolvable:$true] %s10
  %13 = dma.vmem_to_smem %s11, 16, [#allocation4], [#allocation3]
  %15 = dma.done [#allocation3], 16
  %16 = sfence
  $region1: #{tpu_custom_call.1} parent=0
    #allocation5 [shape = 'u8[4096]{0}', space=vmem, size = 0x1000, scoped, tag = 'output window, operand 0, single buffered']
    #allocation6 [shape = 's32[1]{0}', space=sflag, size = 0x4, scoped, tag = 'scoped memory for tpu_custom_call.1']
    %17 = vsyncpa [#allocation6], 0
    // Predicated region
    $region2: #{tpu_custom_call.1} parent=1 // pred_check
      _
    $region3: #{tpu_custom_call.1} parent=1 // pred_check_branch
      %19 = sbr.rel (0) target = $region5
    $region4: #{tpu_custom_call.1} parent=1 // pred_region
      _
    $region5: #{tpu_custom_call.1} parent=1 // pred_fallthru
      _
    // Predicated region
    $region6: #{tpu_custom_call.1} parent=1 // pred_check
      _
    $region7: #{tpu_custom_call.1} parent=1 // pred_check_branch
      %21 = sbr.rel (0) target = $region9
    $region8: #{tpu_custom_call.1} parent=1 // pred_region
      _
    $region9: #{tpu_custom_call.1} parent=1 // pred_fallthru
      _
    // Predicated region
    $region10: #{tpu_custom_call.1} parent=1 // pred_check
      _
    $region11: #{tpu_custom_call.1} parent=1 // pred_check_branch
      %23 = sbr.rel (0) target = $region13
    $region12: #{tpu_custom_call.1} parent=1 // pred_region
      _
    $region13: #{tpu_custom_call.1} parent=1 // pred_fallthru
      _
    %s24 = smul.u32 0, 64
    %s25 = sld [smem:[#allocation4 + %s24]]
    %s26 = scalar_lea.vmem %s1, %s25
    %v27 = vld [vmem:[%s26] sm:$0x1]
    %v28 = vadd.f32 %v27, 0.0
    %s29 = sadd.s32 %s24, 1
    %s30 = sld [smem:[#allocation4 + %s29]]
    %s31 = scalar_lea.vmem %s1, %s30
    %v32 = vld [vmem:[%s31] sm:$0x1]
    %v33 = vadd.f32 %v28, %v32
    %s34 = sadd.s32 %s24, 2
    %s35 = sld [smem:[#allocation4 + %s34]]
    %s36 = scalar_lea.vmem %s1, %s35
    %v37 = vld [vmem:[%s36] sm:$0x1]
    %v38 = vadd.f32 %v33, %v37
    %s39 = sadd.s32 %s24, 3
    %s40 = sld [smem:[#allocation4 + %s39]]
    %s41 = scalar_lea.vmem %s1, %s40
    %v42 = vld [vmem:[%s41] sm:$0x1]
    %v43 = vadd.f32 %v38, %v42
    %s44 = sadd.s32 %s24, 4
    %s45 = sld [smem:[#allocation4 + %s44]]
    %s46 = scalar_lea.vmem %s1, %s45
    %v47 = vld [vmem:[%s46] sm:$0x1]
    %v48 = vadd.f32 %v43, %v47
    %s49 = sadd.s32 %s24, 5
    %s50 = sld [smem:[#allocation4 + %s49]]
    %s51 = scalar_lea.vmem %s1, %s50
    %v52 = vld [vmem:[%s51] sm:$0x1]
    %v53 = vadd.f32 %v48, %v52
    %s54 = sadd.s32 %s24, 6
    %s55 = sld [smem:[#allocation4 + %s54]]
    %s56 = scalar_lea.vmem %s1, %s55
    %v57 = vld [vmem:[%s56] sm:$0x1]
    %v58 = vadd.f32 %v53, %v57
    %s59 = sadd.s32 %s24, 7
    %s60 = sld [smem:[#allocation4 + %s59]]
    %s61 = scalar_lea.vmem %s1, %s60
    %v62 = vld [vmem:[%s61] sm:$0x1]
    %v63 = vadd.f32 %v58, %v62
    %vm64 = vcmask 253952
    %65 = vst.msk [vmem:[#allocation2] sm:$0x1] %vm64, %v63
    %s66 = sadd.s32 %s24, 8
    %s67 = sld [smem:[#allocation4 + %s66]]
    %s68 = scalar_lea.vmem %s1, %s67
    %v69 = vld [vmem:[%s68] sm:$0x1]
    %v70 = vadd.f32 %v69, 0.0
    %s71 = sadd.s32 %s24, 9
    %s72 = sld [smem:[#allocation4 + %s71]]
    %s73 = scalar_lea.vmem %s1, %s72
    %v74 = vld [vmem:[%s73] sm:$0x1]
    %v75 = vadd.f32 %v70, %v74
    %s76 = sadd.s32 %s24, 10
    %s77 = sld [smem:[#allocation4 + %s76]]
    %s78 = scalar_lea.vmem %s1, %s77
    %v79 = vld [vmem:[%s78] sm:$0x1]
    %v80 = vadd.f32 %v75, %v79
    %s81 = sadd.s32 %s24, 11
    %s82 = sld [smem:[#allocation4 + %s81]]
    %s83 = scalar_lea.vmem %s1, %s82
    %v84 = vld [vmem:[%s83] sm:$0x1]
    %v85 = vadd.f32 %v80, %v84
    %s86 = sadd.s32 %s24, 12
    %s87 = sld [smem:[#allocation4 + %s86]]
    %s88 = scalar_lea.vmem %s1, %s87
    %v89 = vld [vmem:[%s88] sm:$0x1]
    %v90 = vadd.f32 %v85, %v89
    %s91 = sadd.s32 %s24, 13
    %s92 = sld [smem:[#allocation4 + %s91]]
    %s93 = scalar_lea.vmem %s1, %s92
    %v94 = vld [vmem:[%s93] sm:$0x1]
    %v95 = vadd.f32 %v90, %v94
    %s96 = sadd.s32 %s24, 14
    %s97 = sld [smem:[#allocation4 + %s96]]
    %s98 = scalar_lea.vmem %s1, %s97
    %v99 = vld [vmem:[%s98] sm:$0x1]
    %v100 = vadd.f32 %v95, %v99
    %s101 = sadd.s32 %s24, 15
    %s102 = sld [smem:[#allocation4 + %s101]]
    %s103 = scalar_lea.vmem %s1, %s102
    %v104 = vld [vmem:[%s103] sm:$0x1]
    %v105 = vadd.f32 %v100, %v104
    %106 = vst.msk [vmem:[#allocation2 + $0x1] sm:$0x1] %vm64, %v105
    %s107 = sadd.s32 %s24, 16
    %s108 = sld [smem:[#allocation4 + %s107]]
    %s109 = scalar_lea.vmem %s1, %s108
    %v110 = vld [vmem:[%s109] sm:$0x1]
    %v111 = vadd.f32 %v110, 0.0
    %s112 = sadd.s32 %s24, 17
    %s113 = sld [smem:[#allocation4 + %s112]]
    %s114 = scalar_lea.vmem %s1, %s113
    %v115 = vld [vmem:[%s114] sm:$0x1]
    %v116 = vadd.f32 %v111, %v115
    %s117 = sadd.s32 %s24, 18
    %s118 = sld [smem:[#allocation4 + %s117]]
    %s119 = scalar_lea.vmem %s1, %s118
    %v120 = vld [vmem:[%s119] sm:$0x1]
    %v121 = vadd.f32 %v116, %v120
    %s122 = sadd.s32 %s24, 19
    %s123 = sld [smem:[#allocation4 + %s122]]
    %s124 = scalar_lea.vmem %s1, %s123
    %v125 = vld [vmem:[%s124] sm:$0x1]
    %v126 = vadd.f32 %v121, %v125
    %s127 = sadd.s32 %s24, 20
    %s128 = sld [smem:[#allocation4 + %s127]]
    %s129 = scalar_lea.vmem %s1, %s128
    %v130 = vld [vmem:[%s129] sm:$0x1]
    %v131 = vadd.f32 %v126, %v130
    %s132 = sadd.s32 %s24, 21
    %s133 = sld [smem:[#allocation4 + %s132]]
    %s134 = scalar_lea.vmem %s1, %s133
    %v135 = vld [vmem:[%s134] sm:$0x1]
    %v136 = vadd.f32 %v131, %v135
    %s137 = sadd.s32 %s24, 22
    %s138 = sld [smem:[#allocation4 + %s137]]
    %s139 = scalar_lea.vmem %s1, %s138
    %v140 = vld [vmem:[%s139] sm:$0x1]
    %v141 = vadd.f32 %v136, %v140
    %s142 = sadd.s32 %s24, 23
    %s143 = sld [smem:[#allocation4 + %s142]]
    %s144 = scalar_lea.vmem %s1, %s143
    %v145 = vld [vmem:[%s144] sm:$0x1]
    %v146 = vadd.f32 %v141, %v145
    %147 = vst.msk [vmem:[#allocation2 + $0x2] sm:$0x1] %vm64, %v146
    %s148 = sadd.s32 %s24, 24
    %s149 = sld [smem:[#allocation4 + %s148]]
    %s150 = scalar_lea.vmem %s1, %s149
    %v151 = vld [vmem:[%s150] sm:$0x1]
    %v152 = vadd.f32 %v151, 0.0
    %s153 = sadd.s32 %s24, 25
    %s154 = sld [smem:[#allocation4 + %s153]]
    %s155 = scalar_lea.vmem %s1, %s154
    %v156 = vld [vmem:[%s155] sm:$0x1]
    %v157 = vadd.f32 %v152, %v156
    %s158 = sadd.s32 %s24, 26
    %s159 = sld [smem:[#allocation4 + %s158]]
    %s160 = scalar_lea.vmem %s1, %s159
    %v161 = vld [vmem:[%s160] sm:$0x1]
    %v162 = vadd.f32 %v157, %v161
    %s163 = sadd.s32 %s24, 27
    %s164 = sld [smem:[#allocation4 + %s163]]
    %s165 = scalar_lea.vmem %s1, %s164
    %v166 = vld [vmem:[%s165] sm:$0x1]
    %v167 = vadd.f32 %v162, %v166
    %s168 = sadd.s32 %s24, 28
    %s169 = sld [smem:[#allocation4 + %s168]]
    %s170 = scalar_lea.vmem %s1, %s169
    %v171 = vld [vmem:[%s170] sm:$0x1]
    %v172 = vadd.f32 %v167, %v171
    %s173 = sadd.s32 %s24, 29
    %s174 = sld [smem:[#allocation4 + %s173]]
    %s175 = scalar_lea.vmem %s1, %s174
    %v176 = vld [vmem:[%s175] sm:$0x1]
    %v177 = vadd.f32 %v172, %v176
    %s178 = sadd.s32 %s24, 30
    %s179 = sld [smem:[#allocation4 + %s178]]
    %s180 = scalar_lea.vmem %s1, %s179
    %v181 = vld [vmem:[%s180] sm:$0x1]
    %v182 = vadd.f32 %v177, %v181
    %s183 = sadd.s32 %s24, 31
    %s184 = sld [smem:[#allocation4 + %s183]]
    %s185 = scalar_lea.vmem %s1, %s184
    %v186 = vld [vmem:[%s185] sm:$0x1]
    %v187 = vadd.f32 %v182, %v186
    %188 = vst.msk [vmem:[#allocation2 + $0x3] sm:$0x1] %vm64, %v187
    %s189 = sadd.s32 %s24, 32
    %s190 = sld [smem:[#allocation4 + %s189]]
    %s191 = scalar_lea.vmem %s1, %s190
    %v192 = vld [vmem:[%s191] sm:$0x1]
    %v193 = vadd.f32 %v192, 0.0
    %s194 = sadd.s32 %s24, 33
    %s195 = sld [smem:[#allocation4 + %s194]]
    %s196 = scalar_lea.vmem %s1, %s195
    %v197 = vld [vmem:[%s196] sm:$0x1]
    %v198 = vadd.f32 %v193, %v197
    %s199 = sadd.s32 %s24, 34
    %s200 = sld [smem:[#allocation4 + %s199]]
    %s201 = scalar_lea.vmem %s1, %s200
    %v202 = vld [vmem:[%s201] sm:$0x1]
    %v203 = vadd.f32 %v198, %v202
    %s204 = sadd.s32 %s24, 35
    %s205 = sld [smem:[#allocation4 + %s204]]
    %s206 = scalar_lea.vmem %s1, %s205
    %v207 = vld [vmem:[%s206] sm:$0x1]
    %v208 = vadd.f32 %v203, %v207
    %s209 = sadd.s32 %s24, 36
    %s210 = sld [smem:[#allocation4 + %s209]]
    %s211 = scalar_lea.vmem %s1, %s210
    %v212 = vld [vmem:[%s211] sm:$0x1]
    %v213 = vadd.f32 %v208, %v212
    %s214 = sadd.s32 %s24, 37
    %s215 = sld [smem:[#allocation4 + %s214]]
    %s216 = scalar_lea.vmem %s1, %s215
    %v217 = vld [vmem:[%s216] sm:$0x1]
    %v218 = vadd.f32 %v213, %v217
    %s219 = sadd.s32 %s24, 38
    %s220 = sld [smem:[#allocation4 + %s219]]
    %s221 = scalar_lea.vmem %s1, %s220
    %v222 = vld [vmem:[%s221] sm:$0x1]
    %v223 = vadd.f32 %v218, %v222
    %s224 = sadd.s32 %s24, 39
    %s225 = sld [smem:[#allocation4 + %s224]]
    %s226 = scalar_lea.vmem %s1, %s225
    %v227 = vld [vmem:[%s226] sm:$0x1]
    %v228 = vadd.f32 %v223, %v227
    %229 = vst.msk [vmem:[#allocation2 + $0x4] sm:$0x1] %vm64, %v228
    %s230 = sadd.s32 %s24, 40
    %s231 = sld [smem:[#allocation4 + %s230]]
    %s232 = scalar_lea.vmem %s1, %s231
    %v233 = vld [vmem:[%s232] sm:$0x1]
    %v234 = vadd.f32 %v233, 0.0
    %s235 = sadd.s32 %s24, 41
    %s236 = sld [smem:[#allocation4 + %s235]]
    %s237 = scalar_lea.vmem %s1, %s236
    %v238 = vld [vmem:[%s237] sm:$0x1]
    %v239 = vadd.f32 %v234, %v238
    %s240 = sadd.s32 %s24, 42
    %s241 = sld [smem:[#allocation4 + %s240]]
    %s242 = scalar_lea.vmem %s1, %s241
    %v243 = vld [vmem:[%s242] sm:$0x1]
    %v244 = vadd.f32 %v239, %v243
    %s245 = sadd.s32 %s24, 43
    %s246 = sld [smem:[#allocation4 + %s245]]
    %s247 = scalar_lea.vmem %s1, %s246
    %v248 = vld [vmem:[%s247] sm:$0x1]
    %v249 = vadd.f32 %v244, %v248
    %s250 = sadd.s32 %s24, 44
    %s251 = sld [smem:[#allocation4 + %s250]]
    %s252 = scalar_lea.vmem %s1, %s251
    %v253 = vld [vmem:[%s252] sm:$0x1]
    %v254 = vadd.f32 %v249, %v253
    %s255 = sadd.s32 %s24, 45
    %s256 = sld [smem:[#allocation4 + %s255]]
    %s257 = scalar_lea.vmem %s1, %s256
    %v258 = vld [vmem:[%s257] sm:$0x1]
    %v259 = vadd.f32 %v254, %v258
    %s260 = sadd.s32 %s24, 46
    %s261 = sld [smem:[#allocation4 + %s260]]
    %s262 = scalar_lea.vmem %s1, %s261
    %v263 = vld [vmem:[%s262] sm:$0x1]
    %v264 = vadd.f32 %v259, %v263
    %s265 = sadd.s32 %s24, 47
    %s266 = sld [smem:[#allocation4 + %s265]]
    %s267 = scalar_lea.vmem %s1, %s266
    %v268 = vld [vmem:[%s267] sm:$0x1]
    %v269 = vadd.f32 %v264, %v268
    %270 = vst.msk [vmem:[#allocation2 + $0x5] sm:$0x1] %vm64, %v269
    %s271 = sadd.s32 %s24, 48
    %s272 = sld [smem:[#allocation4 + %s271]]
    %s273 = scalar_lea.vmem %s1, %s272
    %v274 = vld [vmem:[%s273] sm:$0x1]
    %v275 = vadd.f32 %v274, 0.0
    %s276 = sadd.s32 %s24, 49
    %s277 = sld [smem:[#allocation4 + %s276]]
    %s278 = scalar_lea.vmem %s1, %s277
    %v279 = vld [vmem:[%s278] sm:$0x1]
    %v280 = vadd.f32 %v275, %v279
    %s281 = sadd.s32 %s24, 50
    %s282 = sld [smem:[#allocation4 + %s281]]
    %s283 = scalar_lea.vmem %s1, %s282
    %v284 = vld [vmem:[%s283] sm:$0x1]
    %v285 = vadd.f32 %v280, %v284
    %s286 = sadd.s32 %s24, 51
    %s287 = sld [smem:[#allocation4 + %s286]]
    %s288 = scalar_lea.vmem %s1, %s287
    %v289 = vld [vmem:[%s288] sm:$0x1]
    %v290 = vadd.f32 %v285, %v289
    %s291 = sadd.s32 %s24, 52
    %s292 = sld [smem:[#allocation4 + %s291]]
    %s293 = scalar_lea.vmem %s1, %s292
    %v294 = vld [vmem:[%s293] sm:$0x1]
    %v295 = vadd.f32 %v290, %v294
    %s296 = sadd.s32 %s24, 53
    %s297 = sld [smem:[#allocation4 + %s296]]
    %s298 = scalar_lea.vmem %s1, %s297
    %v299 = vld [vmem:[%s298] sm:$0x1]
    %v300 = vadd.f32 %v295, %v299
    %s301 = sadd.s32 %s24, 54
    %s302 = sld [smem:[#allocation4 + %s301]]
    %s303 = scalar_lea.vmem %s1, %s302
    %v304 = vld [vmem:[%s303] sm:$0x1]
    %v305 = vadd.f32 %v300, %v304
    %s306 = sadd.s32 %s24, 55
    %s307 = sld [smem:[#allocation4 + %s306]]
    %s308 = scalar_lea.vmem %s1, %s307
    %v309 = vld [vmem:[%s308] sm:$0x1]
    %v310 = vadd.f32 %v305, %v309
    %311 = vst.msk [vmem:[#allocation2 + $0x6] sm:$0x1] %vm64, %v310
    %s312 = sadd.s32 %s24, 56
    %s313 = sld [smem:[#allocation4 + %s312]]
    %s314 = scalar_lea.vmem %s1, %s313
    %v315 = vld [vmem:[%s314] sm:$0x1]
    %v316 = vadd.f32 %v315, 0.0
    %s317 = sadd.s32 %s24, 57
    %s318 = sld [smem:[#allocation4 + %s317]]
    %s319 = scalar_lea.vmem %s1, %s318
    %v320 = vld [vmem:[%s319] sm:$0x1]
    %v321 = vadd.f32 %v316, %v320
    %s322 = sadd.s32 %s24, 58
    %s323 = sld [smem:[#allocation4 + %s322]]
    %s324 = scalar_lea.vmem %s1, %s323
    %v325 = vld [vmem:[%s324] sm:$0x1]
    %v326 = vadd.f32 %v321, %v325
    %s327 = sadd.s32 %s24, 59
    %s328 = sld [smem:[#allocation4 + %s327]]
    %s329 = scalar_lea.vmem %s1, %s328
    %v330 = vld [vmem:[%s329] sm:$0x1]
    %v331 = vadd.f32 %v326, %v330
    %s332 = sadd.s32 %s24, 60
    %s333 = sld [smem:[#allocation4 + %s332]]
    %s334 = scalar_lea.vmem %s1, %s333
    %v335 = vld [vmem:[%s334] sm:$0x1]
    %v336 = vadd.f32 %v331, %v335
    %s337 = sadd.s32 %s24, 61
    %s338 = sld [smem:[#allocation4 + %s337]]
    %s339 = scalar_lea.vmem %s1, %s338
    %v340 = vld [vmem:[%s339] sm:$0x1]
    %v341 = vadd.f32 %v336, %v340
    %s342 = sadd.s32 %s24, 62
    %s343 = sld [smem:[#allocation4 + %s342]]
    %s344 = scalar_lea.vmem %s1, %s343
    %v345 = vld [vmem:[%s344] sm:$0x1]
    %v346 = vadd.f32 %v341, %v345
    %s347 = sadd.s32 %s24, 63
    %s348 = sld [smem:[#allocation4 + %s347]]
    %s349 = scalar_lea.vmem %s1, %s348
    %v350 = vld [vmem:[%s349] sm:$0x1]
    %v351 = vadd.f32 %v346, %v350
    %352 = vst.msk [vmem:[#allocation2 + $0x7] sm:$0x1] %vm64, %v351
    %v353 = vld [vmem:[#allocation2] sm:$0xff]
    %v354 = vld [vmem:[%s2] sm:$0xff]
    %v355 = vld [vmem:[%s2 + $0x8] sm:$0xff]
    %v356 = vld [vmem:[%s2 + $0x10] sm:$0xff]
    %v357 = vld [vmem:[%s2 + $0x18] sm:$0xff]
    %v358 = vld [vmem:[%s3] sm:$0x1]
    %v360 = vperm.slane %v358, 0
    %vm362 = vcmask 261120
    %v364 = vsel %vm362, %v353, 0
    %366 = vmatpush.msra.mxu0 0.0
    %367 = vmatpush.msra.mxu0 0.0
    %368 = vmatpush.msra.mxu0 0.0
    %369 = vmatpush.msra.mxu0 0.0
    %370 = vmatpush.msra.mxu0 0.0
    %371 = vmatpush.msra.mxu0 0.0
    %372 = vmatpush.msra.mxu0 0.0
    %373 = vmatpush.msra.mxu0 0.0
    %374 = vmatpush.msra.mxu0 0.0
    %375 = vmatpush.msra.mxu0 0.0
    %376 = vmatpush.msra.mxu0 0.0
    %377 = vmatpush.msra.mxu0 0.0
    %378 = vmatpush.msra.mxu0 %v357
    %379 = vmatpush.msra.mxu0 %v356
    %380 = vmatpush.msra.mxu0 %v355
    %381 = vmatpush.msra.mxu0 %v354
    %382 = vmatmul.f32.gmra.mxu0 %v364
    %v383 = vpop.f32.mrf.mxu0
    %v384 = vadd.f32 %v360, %v383
    %385 = vdwg.mxu0
    %386 = vmax.xlane.f32.xlu0 %v384
    %v387 = vpop.xlane.xlu0 %386
    %v388 = vsub.f32 %v384, %v387
    %v389 = vmul.f32 %v388, 1.442695
    %v390 = vpow.pop %v389
    %391 = vadd.xlane.f32.xlu0 %v390
    %v392 = vpop.xlane.xlu0 %391
    %v393 = vrcp.pop %v392
    %v394 = vmul.f32 %v390, %v393
    %395 = vst [vmem:[#allocation5] sm:$0xff] %v394
    // Predicated region
    $region14: #{tpu_custom_call.1} parent=1 // pred_check
      _
    $region15: #{tpu_custom_call.1} parent=1 // pred_check_branch
      %397 = sbr.rel (0) target = $region17
    $region16: #{tpu_custom_call.1} parent=1 // pred_region
      %399 = vsyncadd [#allocation6], 0
      %s401 = sshll.u32 [#allocation5], 4
      %s402 = int_to_ptr.vmem [resolvable:$true] %s401
      %s403 = sshll.u32 %s4, 4
      %s404 = int_to_ptr.hbm [resolvable:$true] %s403
      %406 = dma.vmem_to_hbm [thread:$0]  %s402, 128, %s404, [#allocation6]
    $region17: #{tpu_custom_call.1} parent=1 // pred_fallthru
      _
    // Predicated region
    $region18: #{tpu_custom_call.1} parent=1 // pred_check
      _
    $region19: #{tpu_custom_call.1} parent=1 // pred_check_branch
      %408 = sbr.rel (0) target = $region21
    $region20: #{tpu_custom_call.1} parent=1 // pred_region
      %410 = dma.done [#allocation6], 128
    $region21: #{tpu_custom_call.1} parent=1 // pred_fallthru
      _
    %411 = vsyncpa [#allocation6], 1

</llo_original>
